<compile_context>
chip_gen: v6e
topology: v6e:2x2x1
jax: 0.10.0
libtpu: 0.0.40
codegen_flags: <defaults>
</compile_context>

<pallas_src>
import numpy as np
import jax
import jax.numpy as jnp
from jax.experimental import pallas as pl
from jax.experimental.pallas import tpu as pltpu


def posemb_kernel(pos_ref, freqs_ref, offs_ref, out_ref):
    # pos:   (TM, 1) position tile
    # freqs: (1, num_channels) duplicated frequency row (VMEM-resident)
    # offs:  (1, num_channels) phase offsets (0 for cos half, -pi/2 for sin half)
    # Broadcast outer product + offset, then one full-width EUP cos and one
    # unmasked lane-dense store.
    out_ref[...] = jnp.cos(pos_ref[...] * freqs_ref[...] + offs_ref[...])


def positional_embedding(x, num_channels, max_positions=10000, endpoint=False,
                         tile_rows=1024):
    """x: (B, C) float -> (B, C * num_channels); matches the PyTorch module."""
    assert num_channels % 2 == 0, "num_channels must be even"
    half = num_channels // 2
    assert not (endpoint and half == 1), "endpoint=True with num_channels==2 divides by zero"

    b, c = x.shape
    denom = float(half - (1 if endpoint else 0))
    base = (1.0 / max_positions) ** (jnp.arange(half, dtype=jnp.float32) / denom)

    # Duplicate freqs across the full channel width and add a -pi/2 phase shift
    # on the second half so a single cos produces [cos(phase) | sin(phase)].
    freqs_dup = jnp.concatenate([base, base]).reshape(1, num_channels)
    offs = jnp.concatenate([
        jnp.zeros((half,), jnp.float32),
        jnp.full((half,), -jnp.pi / 2, jnp.float32),
    ]).reshape(1, num_channels)

    n = b * c
    pos = x.reshape(n, 1).astype(jnp.float32)

    # Row tile: multiple of 8 sublanes, capped at tile_rows, and sized so the
    # grid has >= 2 steps when N is moderate (lets v7x shard across both TCs).
    def round_up(v, m):
        return ((v + m - 1) // m) * m

    tm = max(8, min(tile_rows, round_up(pl.cdiv(n, 2), 8)))
    grid = (pl.cdiv(n, tm),)   # ragged tail block masked by Pallas — no pad/slice

    out = pl.pallas_call(
        posemb_kernel,
        grid=grid,
        in_specs=[
            pl.BlockSpec((tm, 1), lambda i: (i, 0)),             # positions: tiled rows
            pl.BlockSpec((1, num_channels), lambda i: (0, 0)),   # freqs: resident block
            pl.BlockSpec((1, num_channels), lambda i: (0, 0)),   # offsets: resident block
        ],
        out_specs=pl.BlockSpec((tm, num_channels), lambda i: (i, 0)),
        out_shape=jax.ShapeDtypeStruct((n, num_channels), jnp.float32),
        compiler_params=pltpu.CompilerParams(
            dimension_semantics=("parallel",)),
    )(pos, freqs_dup, offs)

    # '(b c) emb_ch -> b (c emb_ch)' is a plain row-major reshape (bitcast).
    return out.reshape(b, c * num_channels)


def ref_positional_embedding(x, num_channels, max_positions=10000, endpoint=False):
    """Pure-JAX reference mirroring the PyTorch forward."""
    b, c = x.shape
    half = num_channels // 2
    freqs = jnp.arange(half, dtype=jnp.float32)
    freqs = freqs / (half - (1 if endpoint else 0))
    freqs = (1.0 / max_positions) ** freqs
    xf = x.reshape(b * c).astype(jnp.float32)
    phase = xf[:, None] * freqs[None, :]                  # torch.ger
    y = jnp.concatenate([jnp.cos(phase), jnp.sin(phase)], axis=1)
    return y.reshape(b, c * num_channels)


if __name__ == "__main__":
    B, C = 2, 4                 # batch of 2, 4 scalar positions each
    NUM_CHANNELS = 128          # embedding channels (lane-dense output width)

    key = jax.random.PRNGKey(0)
    x = jax.random.normal(key, (B, C), jnp.float32) * 10.0

    fwd = jax.jit(lambda xx: positional_embedding(xx, NUM_CHANNELS))
    out = jax.block_until_ready(fwd(x))

    ref = ref_positional_embedding(x, NUM_CHANNELS)
    assert out.shape == (B, C * NUM_CHANNELS)
    np.testing.assert_allclose(np.asarray(out), np.asarray(ref),
                               rtol=1e-4, atol=1e-4)

    print("KERNEL_OK")
</pallas_src>

<mosaic_0001>
module attributes {stable_mosaic.version = 11 : i64} {
  func.func @posemb_kernel(%arg0: i32, %arg1: memref<8x1xf32, #tpu.memory_space<vmem>>, %arg2: memref<1x128xf32, #tpu.memory_space<vmem>>, %arg3: memref<1x128xf32, #tpu.memory_space<vmem>>, %arg4: memref<8x128xf32, #tpu.memory_space<vmem>>) attributes {dimension_semantics = [#tpu.dimension_semantics<parallel>], iteration_bounds = array<i64: 1>, scalar_prefetch = 0 : i64, scratch_operands = 0 : i64, tpu.core_type = #tpu.core_type<tc>, window_params = [{transform_indices = @transform_0, window_bounds = array<i64: 8, 1>}, {pipeline_mode = #tpu.pipeline_mode<synchronous>, transform_indices = @transform_1, window_bounds = array<i64: 1, 128>}, {pipeline_mode = #tpu.pipeline_mode<synchronous>, transform_indices = @transform_2, window_bounds = array<i64: 1, 128>}, {transform_indices = @transform_3, window_bounds = array<i64: 8, 128>}]} {
    %c0 = arith.constant 0 : index
    %c0_0 = arith.constant 0 : index
    %0 = vector.load %arg1[%c0, %c0_0] : memref<8x1xf32, #tpu.memory_space<vmem>>, vector<8x1xf32>
    %c0_1 = arith.constant 0 : index
    %c0_2 = arith.constant 0 : index
    %1 = vector.load %arg2[%c0_1, %c0_2] : memref<1x128xf32, #tpu.memory_space<vmem>>, vector<1x128xf32>
    %2 = vector.broadcast %0 : vector<8x1xf32> to vector<8x128xf32>
    %3 = vector.broadcast %1 : vector<1x128xf32> to vector<8x128xf32>
    %4 = arith.mulf %2, %3 : vector<8x128xf32>
    %c0_3 = arith.constant 0 : index
    %c0_4 = arith.constant 0 : index
    %5 = vector.load %arg3[%c0_3, %c0_4] : memref<1x128xf32, #tpu.memory_space<vmem>>, vector<1x128xf32>
    %6 = vector.broadcast %5 : vector<1x128xf32> to vector<8x128xf32>
    %7 = arith.addf %4, %6 : vector<8x128xf32>
    %8 = math.cos %7 : vector<8x128xf32>
    %c0_5 = arith.constant 0 : index
    %c0_6 = arith.constant 0 : index
    %9 = vector.load %arg4[%c0_5, %c0_6] : memref<8x128xf32, #tpu.memory_space<vmem>>, vector<8x128xf32>
    tpu.vector_store %arg4[%c0_5, %c0_6], %8 {strides = array<i32>} : memref<8x128xf32, #tpu.memory_space<vmem>>, vector<8x128xf32>,
    return
  }
  func.func @transform_0(%arg0: i32) -> (i32, i32) {
    %c0_i32 = arith.constant 0 : i32
    %c0_i32_0 = arith.constant 0 : i32
    return %arg0, %c0_i32 : i32, i32
  }
  func.func @transform_1(%arg0: i32) -> (i32, i32) {
    %c0_i32 = arith.constant 0 : i32
    %c0_i32_0 = arith.constant 0 : i32
    %c0_i32_1 = arith.constant 0 : i32
    return %c0_i32, %c0_i32_0 : i32, i32
  }
  func.func @transform_2(%arg0: i32) -> (i32, i32) {
    %c0_i32 = arith.constant 0 : i32
    %c0_i32_0 = arith.constant 0 : i32
    %c0_i32_1 = arith.constant 0 : i32
    return %c0_i32, %c0_i32_0 : i32, i32
  }
  func.func @transform_3(%arg0: i32) -> (i32, i32) {
    %c0_i32 = arith.constant 0 : i32
    %c0_i32_0 = arith.constant 0 : i32
    return %arg0, %c0_i32 : i32, i32
  }
}

</mosaic_0001>

<llo_original>
// kernel: _lambda_.1
$region0: #{_lambda_.1}
  #allocation0 [shape = 'u32[]', space=smem, size = 0x4, offset = 0x4, fixed_abs, tag = 'smem constant byte address 0x4 - core index']
  #allocation1 [shape = 'u32[144,128]{1,0:T(1,128)}', space=vmem, size = 0x12000, scoped, tag = 'internal scratch']
  %s0 = inlined_call_operand.vmem [shape: f32[8,1], index: 0, kind: input, shape index: {}]
  %s1 = inlined_call_operand.vmem [shape: f32[1,128], index: 1, kind: input, shape index: {}]
  %s2 = inlined_call_operand.vmem [shape: f32[1,128], index: 2, kind: input, shape index: {}]
  %s3 = inlined_call_operand.vmem [shape: f32[8,128], index: 3, kind: output, shape index: {}]
  %s4 = sld [smem:[#allocation0]]
  $region22: #{_lambda_.1} parent=0
    _
  %s6 = ssub.s32 1, %s4
  %s7 = scalar_select 0, %s6, %s4
  // Predicated region
  $region2: #{_lambda_.1} parent=0 // pred_check
    _
  $region3: #{_lambda_.1} parent=0 // pred_check_branch
    %9 = sbr.rel (0) target = $region5
  $region4: #{_lambda_.1} parent=0 // pred_region
    _
  $region5: #{_lambda_.1} parent=0 // pred_fallthru
    _
  // Predicated region
  $region6: #{_lambda_.1} parent=0 // pred_check
    _
  $region7: #{_lambda_.1} parent=0 // pred_check_branch
    %11 = sbr.rel (0) target = $region9
  $region8: #{_lambda_.1} parent=0 // pred_region
    _
  $region9: #{_lambda_.1} parent=0 // pred_fallthru
    _
  // Predicated region
  $region10: #{_lambda_.1} parent=0 // pred_check
    _
  $region11: #{_lambda_.1} parent=0 // pred_check_branch
    %13 = sbr.rel (0) target = $region13
  $region12: #{_lambda_.1} parent=0 // pred_region
    _
  $region13: #{_lambda_.1} parent=0 // pred_fallthru
    _
  %v14 = vld [vmem:[%s0] sm:$0xff]
  %v15 = vld [vmem:[%s1] sm:$0x1]
  %17 = vset.pattern.permute.xlu0 0
  %18 = vperm.xlu0 %17, %v14
  %v19 = vpop.permute.xlu0 %18
  %v22 = vlaneseq
  %v23 = vshrl.u32 %v22, 7
  %v24 = vsub.s32 0, %v23
  %v25 = vrot.slane %v15, %v24
  %v27 = vmul.f32 %v19, %v25
  %v28 = vld [vmem:[%s2] sm:$0x1]
  %v30 = vlaneseq
  %v31 = vshrl.u32 %v30, 7
  %v32 = vsub.s32 0, %v31
  %v33 = vrot.slane %v28, %v32
  %v35 = vadd.f32 %v27, %v33
  %v36 = vand.u32 2147483647, %v35
  %vm37 = vcmp.le.f32.partialorder %v36, 0.7853982
  %vm38 = vcmp.lt.s32.totalorder %v35, 0
  %v39 = vand.u32 %v35, 2139095040
  %v40 = vshrl.u32 %v39, 23
  %v41 = vsub.s32 %v40, 127
  %v42 = vand.u32 2147483647, %v35
  %v43 = vand.u32 %v42, 8388607
  %v44 = vor.u32 %v43, 8388608
  %v45 = vsub.s32 0, %v44
  %v46 = vadd.s32 %v41, 1
  %vm47 = vcmp.gt.s32.totalorder %v46, 0
  %v48 = vsel %vm47, %v46, 0
  %v49 = vshrl.u32 %v48, 5
  %v50 = vand.u32 %v48, 31
  %v51 = vsub.s32 32, %v50
  %v52 = vshrl.u32 683565275, %v51
  %v53 = vshll.u32 683565275, %v50
  %v54 = vshrl.u32 2475754826, %v51
  %v55 = vor.u32 %v53, %v54
  %v56 = vshll.u32 2475754826, %v50
  %v57 = vshrl.u32 2131351028, %v51
  %v58 = vor.u32 %v56, %v57
  %v59 = vshll.u32 2131351028, %v50
  %v60 = vshrl.u32 2102212464, %v51
  %v61 = vor.u32 %v59, %v60
  %v62 = vshll.u32 2102212464, %v50
  %v63 = vshrl.u32 920167782, %v51
  %v64 = vor.u32 %v62, %v63
  %v65 = vshll.u32 920167782, %v50
  %v66 = vshrl.u32 1326507024, %v51
  %v67 = vor.u32 %v65, %v66
  %vm68 = vcmp.lt.s32.totalorder %v49, 1
  %vm69 = vcmp.lt.s32.totalorder %v49, 2
  %vm70 = vcmp.lt.s32.totalorder %v49, 3
  %vm71 = vcmp.lt.s32.totalorder %v49, 4
  %v72 = vsel %vm68, %v52, %v55
  %v73 = vsel %vm71, %v61, 2102212464
  %v74 = vsel %vm70, %v58, %v73
  %v75 = vsel %vm69, %v72, %v74
  %v76 = vsel %vm68, %v55, %v58
  %v77 = vsel %vm71, %v64, 920167782
  %v78 = vsel %vm70, %v61, %v77
  %v79 = vsel %vm69, %v76, %v78
  %v80 = vsel %vm68, %v58, %v61
  %v81 = vsel %vm71, %v67, 1326507024
  %v82 = vsel %vm70, %v64, %v81
  %v83 = vsel %vm69, %v80, %v82
  %v84 = vshll.u32 %v44, 8
  %v85 = vmul.u32.u64.compose %v84, %v83
  %v86 = vextract.low.u32 %v85
  %v87 = vextract.high.u32 %v85
  %v88 = vmul.u32.u64.compose %v84, %v79
  %v89 = vextract.low.u32 %v88
  %v90 = vextract.high.u32 %v88
  %v91 = vmul.u32 %v84, %v75
  %v92 = vadd.s32 %v87, %v89
  %vm93 = vc.u32 %v87, %v89
  %v94 = vadd.s32 %v90, 1
  %v95 = vsel %vm93, %v94, %v90
  %v96 = vadd.s32 %v91, %v95
  %v97 = vadd.s32 %v96, 536870912
  %v98 = vshrl.u32 %v97, 30
  %v99 = vshll.u32 %v98, 30
  %v100 = vsub.s32 %v96, %v99
  %vm101 = vcmp.lt.s32.totalorder %v100, 0
  %v102 = vsub.s32 0, %v100
  %v103 = vsel %vm101, %v102, %v100
  %v104 = vclz %v103
  %v105 = vsub.s32 %v104, 2
  %vm106 = vcmp.gt.s32.totalorder 0, %v105
  %v107 = vsel %vm106, 0, %v105
  %v108 = vsub.s32 32, %v107
  %v109 = vshll.u32 %v100, %v107
  %v110 = vshrl.u32 %v92, %v108
  %v111 = vor.u32 %v109, %v110
  %v112 = vsub.s32 4294967266, %v107
  %v113 = vadd.s32 %v112, 127
  %v114 = vshll.u32 %v113, 23
  %v115 = vor.u32 4788187, %v114
  %v116 = vand.u32 2147483647, %v115
  %v118 = vcvt.s32.f32 %v111
  %v119 = vmul.f32 %v118, %v116
  %v120 = vxor.u32 %v119, 2147483648
  %v121 = vsel %vm38, %v120, %v119
  %v122 = vsub.s32 4, %v98
  %v123 = vsel %vm38, %v122, %v98
  %v124 = vsel %vm37, %v35, %v121
  %v125 = vsel %vm37, 0, %v123
  %v126 = vcosq.f32.pop %v124
  %v127 = vsinq.f32.pop %v124
  %vm128 = vweird.f32 %v35
  %v129 = vand.u32 %v125, 3
  %vm130 = vcmp.lt.s32.totalorder %v129, 2
  %vm131 = vcmp.eq.s32.totalorder %v129, 0
  %v132 = vxor.u32 %v127, 2147483648
  %v133 = vsel %vm131, %v126, %v132
  %vm134 = vcmp.eq.s32.totalorder %v129, 2
  %v135 = vxor.u32 %v126, 2147483648
  %v136 = vsel %vm134, %v135, %v127
  %v137 = vsel %vm130, %v133, %v136
  %v138 = vsel %vm128, nan, %v137
  %139 = vst [vmem:[%s3] sm:$0xff] %v138
  // Predicated region
  $region14: #{_lambda_.1} parent=0 // pred_check
    _
  $region15: #{_lambda_.1} parent=0 // pred_check_branch
    %141 = sbr.rel (0) target = $region17
  $region16: #{_lambda_.1} parent=0 // pred_region
    _
  $region17: #{_lambda_.1} parent=0 // pred_fallthru
    _
  // Predicated region
  $region18: #{_lambda_.1} parent=0 // pred_check
    _
  $region19: #{_lambda_.1} parent=0 // pred_check_branch
    %143 = sbr.rel (0) target = $region21
  $region20: #{_lambda_.1} parent=0 // pred_region
    _
  $region21: #{_lambda_.1} parent=0 // pred_fallthru
    _

</llo_original>
